<compile_context>
chip_gen: v7x
topology: tpu7x:2x2x1
jax: 0.10.0
libtpu: 0.0.40
codegen_flags: <defaults>
</compile_context>

<pallas_src>
import jax
import jax.numpy as jnp
from jax import lax
from jax.experimental import pallas as pl
from jax.experimental.pallas import tpu as pltpu


def refinement_kernel(x_ref,
                      w1_ref, t1_ref,
                      w2_ref, t2_ref,
                      w3t_ref, t3_ref,
                      wl_ref, bl_ref,
                      o_ref):
    # Block 1: Linear(size0,128) (BN scale pre-folded into w1) -> +shift -> ReLU
    h = jnp.dot(x_ref[...], w1_ref[...], preferred_element_type=jnp.float32)
    h = jnp.maximum(h + t1_ref[...], 0.0)                      # (tm, 128) f32

    # Block 2: Linear(128,64) -> +shift -> ReLU
    h = jnp.dot(h.astype(jnp.bfloat16), w2_ref[...],
                preferred_element_type=jnp.float32)
    h = jnp.maximum(h + t2_ref[...], 0.0)                      # (tm, 64) f32

    # Block 3, computed transposed (lane-dense tail):
    #   h3t[c, b] = sum_k w3t[c, k] * h[b, k]   (A @ B^T contraction)
    h3t = lax.dot_general(w3t_ref[...], h.astype(jnp.bfloat16),
                          (((1,), (1,)), ((), ())),
                          preferred_element_type=jnp.float32)  # (16, tm) f32
    h3t = jnp.maximum(h3t + t3_ref[...], 0.0)                  # t3 is (16, 1)

    # F.dropout(p=0.4, training=False) is identity in eval mode.
    # TODO(synk): training-mode dropout (random mask + 1/(1-p) scale) not implemented.

    # last: Linear(16, 1, bias=True) as VPU multiply + sublane reduce ->
    # unmasked lane-dense (1, tm) row store.
    out_row = jnp.sum(h3t * wl_ref[...], axis=0, keepdims=True) + bl_ref[...]
    o_ref[...] = out_row.astype(o_ref.dtype)


def refinement_forward(x, kparams, *, tm=256):
    """x: (N, size0) float32.  Returns (N, 1) float32."""
    w1, t1, w2, t2, w3t, t3, wl, bl = kparams
    N, size0 = x.shape

    n_pad = pl.cdiv(N, tm) * tm
    xb = x.astype(jnp.bfloat16)
    if n_pad != N:
        xb = jnp.pad(xb, ((0, n_pad - N), (0, 0)))             # zero-pad tail rows
    grid = (n_pad // tm,)

    def full(arr):  # un-tiled parameter: same full block every grid step
        return pl.BlockSpec(arr.shape, lambda i: (0,) * arr.ndim)

    out = pl.pallas_call(
        refinement_kernel,
        out_shape=jax.ShapeDtypeStruct((1, n_pad), jnp.float32),
        grid_spec=pltpu.PrefetchScalarGridSpec(
            num_scalar_prefetch=0,
            grid=grid,
            in_specs=[
                pl.BlockSpec((tm, size0), lambda i: (i, 0)),
                full(w1), full(t1),
                full(w2), full(t2),
                full(w3t), full(t3),
                full(wl), full(bl),
            ],
            out_specs=pl.BlockSpec((1, tm), lambda i: (0, i)),
        ),
        compiler_params=pltpu.CompilerParams(
            dimension_semantics=("parallel",)),
    )(xb, w1, t1, w2, t2, w3t, t3, wl, bl)

    # (1, N_pad) -> (N, 1); trivial row-major reshape + tail slice.
    return out.reshape(n_pad, 1)[:N]


def init_raw_params(key, size0):
    """Deterministic synthetic parameters with PyTorch layouts:
    Linear weights (out, in); BatchNorm1d gamma/beta/running_mean/running_var."""
    dims = [(size0, 128), (128, 64), (64, 16)]
    raw = []
    for din, dout in dims:
        key, kw, kg, kb, km, kv = jax.random.split(key, 6)
        w = jax.random.normal(kw, (dout, din), jnp.float32) * 0.05
        gamma = 1.0 + 0.1 * jax.random.normal(kg, (dout,), jnp.float32)
        beta = 0.1 * jax.random.normal(kb, (dout,), jnp.float32)
        mean = 0.1 * jax.random.normal(km, (dout,), jnp.float32)
        var = jnp.abs(jax.random.normal(kv, (dout,), jnp.float32)) + 0.5
        raw.append((w, gamma, beta, mean, var))
    key, kwl, kbl = jax.random.split(key, 3)
    wl = jax.random.normal(kwl, (1, 16), jnp.float32) * 0.1     # torch (out, in)
    bl = 0.01 * jax.random.normal(kbl, (1,), jnp.float32)
    return raw, wl, bl


def prepare_params(raw, wl, bl, eps=1e-5):
    """Fold BN(eval) scale into the weights, keep shifts; cast matmul weights to bf16."""
    def fold(w, g, b, m, v):
        scale = g / jnp.sqrt(v + eps)            # (out,)
        shift = b - m * scale                    # (out,)
        return w * scale[:, None], shift         # scale per output row (out, in)

    (w1, g1, b1, m1, v1), (w2, g2, b2, m2, v2), (w3, g3, b3, m3, v3) = raw
    w1f, t1 = fold(w1, g1, b1, m1, v1)           # (128, size0)
    w2f, t2 = fold(w2, g2, b2, m2, v2)           # (64, 128)
    w3f, t3 = fold(w3, g3, b3, m3, v3)           # (16, 64)
    return (
        w1f.T.astype(jnp.bfloat16),              # (size0, 128)  x @ W layout
        t1.reshape(1, 128),
        w2f.T.astype(jnp.bfloat16),              # (128, 64)
        t2.reshape(1, 64),
        w3f.astype(jnp.bfloat16),                # (16, 64)  already transposed layout
        t3.reshape(16, 1),
        wl.reshape(16, 1),                       # (16, 1) column, f32
        bl.reshape(1, 1),                        # (1, 1)  f32
    )


def reference_forward(x, raw, wl, bl, eps=1e-5):
    """Pure-JAX f32 reference of the PyTorch eval-mode forward."""
    h = x
    for (w, g, b, m, v) in raw:
        h = h @ w.T
        h = (h - m) / jnp.sqrt(v + eps) * g + b
        h = jnp.maximum(h, 0.0)
    return h @ wl.T + bl


if __name__ == "__main__":
    key = jax.random.PRNGKey(0)
    size0, N = 32, 300                            # N not a multiple of tm -> exercises padding

    kx, kp = jax.random.split(key)
    x = jax.random.normal(kx, (N, size0), jnp.float32)
    raw, wl, bl = init_raw_params(kp, size0)
    kparams = prepare_params(raw, wl, bl)

    out = refinement_forward(x, kparams, tm=256)
    out = jax.block_until_ready(out)
    assert out.shape == (N, 1)

    ref = reference_forward(x, raw, wl, bl)
    max_err = float(jnp.max(jnp.abs(out - ref)))
    assert jnp.allclose(out, ref, atol=5e-2, rtol=5e-2), \
        f"mismatch vs JAX reference (max abs err {max_err})"

    print("KERNEL_OK")
</pallas_src>

<mosaic_0001>
module attributes {stable_mosaic.version = 11 : i64} {
  func.func @refinement_kernel(%arg0: i32, %arg1: memref<256x32xbf16, #tpu.memory_space<vmem>>, %arg2: memref<32x128xbf16, #tpu.memory_space<vmem>>, %arg3: memref<1x128xf32, #tpu.memory_space<vmem>>, %arg4: memref<128x64xbf16, #tpu.memory_space<vmem>>, %arg5: memref<1x64xf32, #tpu.memory_space<vmem>>, %arg6: memref<16x64xbf16, #tpu.memory_space<vmem>>, %arg7: memref<16x1xf32, #tpu.memory_space<vmem>>, %arg8: memref<16x1xf32, #tpu.memory_space<vmem>>, %arg9: memref<1x1xf32, #tpu.memory_space<vmem>>, %arg10: memref<1x256xf32, #tpu.memory_space<vmem>>) attributes {dimension_semantics = [#tpu.dimension_semantics<parallel>], iteration_bounds = array<i64: 2>, scalar_prefetch = 0 : i64, scratch_operands = 0 : i64, tpu.core_type = #tpu.core_type<tc>, window_params = [{transform_indices = @transform_0, window_bounds = array<i64: 256, 32>}, {pipeline_mode = #tpu.pipeline_mode<synchronous>, transform_indices = @transform_1, window_bounds = array<i64: 32, 128>}, {pipeline_mode = #tpu.pipeline_mode<synchronous>, transform_indices = @transform_2, window_bounds = array<i64: 1, 128>}, {pipeline_mode = #tpu.pipeline_mode<synchronous>, transform_indices = @transform_3, window_bounds = array<i64: 128, 64>}, {pipeline_mode = #tpu.pipeline_mode<synchronous>, transform_indices = @transform_4, window_bounds = array<i64: 1, 64>}, {pipeline_mode = #tpu.pipeline_mode<synchronous>, transform_indices = @transform_5, window_bounds = array<i64: 16, 64>}, {pipeline_mode = #tpu.pipeline_mode<synchronous>, transform_indices = @transform_6, window_bounds = array<i64: 16, 1>}, {pipeline_mode = #tpu.pipeline_mode<synchronous>, transform_indices = @transform_7, window_bounds = array<i64: 16, 1>}, {pipeline_mode = #tpu.pipeline_mode<synchronous>, transform_indices = @transform_8, window_bounds = array<i64: 1, 1>}, {transform_indices = @transform_9, window_bounds = array<i64: 1, 256>}]} {
    %c0 = arith.constant 0 : index
    %c0_0 = arith.constant 0 : index
    %0 = vector.load %arg1[%c0, %c0_0] : memref<256x32xbf16, #tpu.memory_space<vmem>>, vector<256x32xbf16>
    %c0_1 = arith.constant 0 : index
    %c0_2 = arith.constant 0 : index
    %1 = vector.load %arg2[%c0_1, %c0_2] : memref<32x128xbf16, #tpu.memory_space<vmem>>, vector<32x128xbf16>
    %cst = arith.constant dense<0.000000e+00> : vector<256x128xf32>
    %2 = tpu.matmul %0, %1, %cst {dimension_numbers = #tpu.dot_dimension_numbers<[1], [0], [0], [1], [0, 0, 1, 1], [], []>} : vector<256x32xbf16>, vector<32x128xbf16>, vector<256x128xf32> -> vector<256x128xf32>
    %c0_3 = arith.constant 0 : index
    %c0_4 = arith.constant 0 : index
    %3 = vector.load %arg3[%c0_3, %c0_4] : memref<1x128xf32, #tpu.memory_space<vmem>>, vector<1x128xf32>
    %4 = vector.broadcast %3 : vector<1x128xf32> to vector<256x128xf32>
    %5 = arith.addf %2, %4 : vector<256x128xf32>
    %cst_5 = arith.constant 0.000000e+00 : f32
    %6 = vector.broadcast %cst_5 : f32 to vector<256x128xf32>
    %7 = arith.maximumf %5, %6 : vector<256x128xf32>
    %8 = arith.truncf %7 : vector<256x128xf32> to vector<256x128xbf16>
    %c0_6 = arith.constant 0 : index
    %c0_7 = arith.constant 0 : index
    %9 = vector.load %arg4[%c0_6, %c0_7] : memref<128x64xbf16, #tpu.memory_space<vmem>>, vector<128x64xbf16>
    %cst_8 = arith.constant dense<0.000000e+00> : vector<256x64xf32>
    %10 = tpu.matmul %8, %9, %cst_8 {dimension_numbers = #tpu.dot_dimension_numbers<[1], [0], [0], [1], [0, 0, 1, 1], [], []>} : vector<256x128xbf16>, vector<128x64xbf16>, vector<256x64xf32> -> vector<256x64xf32>
    %c0_9 = arith.constant 0 : index
    %c0_10 = arith.constant 0 : index
    %11 = vector.load %arg5[%c0_9, %c0_10] : memref<1x64xf32, #tpu.memory_space<vmem>>, vector<1x64xf32>
    %12 = vector.broadcast %11 : vector<1x64xf32> to vector<256x64xf32>
    %13 = arith.addf %10, %12 : vector<256x64xf32>
    %cst_11 = arith.constant 0.000000e+00 : f32
    %14 = vector.broadcast %cst_11 : f32 to vector<256x64xf32>
    %15 = arith.maximumf %13, %14 : vector<256x64xf32>
    %c0_12 = arith.constant 0 : index
    %c0_13 = arith.constant 0 : index
    %16 = vector.load %arg6[%c0_12, %c0_13] : memref<16x64xbf16, #tpu.memory_space<vmem>>, vector<16x64xbf16>
    %17 = arith.truncf %15 : vector<256x64xf32> to vector<256x64xbf16>
    %cst_14 = arith.constant dense<0.000000e+00> : vector<16x256xf32>
    %18 = tpu.matmul %16, %17, %cst_14 {dimension_numbers = #tpu.dot_dimension_numbers<[1], [1], [0], [0], [0, 0, 1, 0], [], []>} : vector<16x64xbf16>, vector<256x64xbf16>, vector<16x256xf32> -> vector<16x256xf32>
    %c0_15 = arith.constant 0 : index
    %c0_16 = arith.constant 0 : index
    %19 = vector.load %arg7[%c0_15, %c0_16] : memref<16x1xf32, #tpu.memory_space<vmem>>, vector<16x1xf32>
    %20 = vector.broadcast %19 : vector<16x1xf32> to vector<16x256xf32>
    %21 = arith.addf %18, %20 : vector<16x256xf32>
    %cst_17 = arith.constant 0.000000e+00 : f32
    %22 = vector.broadcast %cst_17 : f32 to vector<16x256xf32>
    %23 = arith.maximumf %21, %22 : vector<16x256xf32>
    %c0_18 = arith.constant 0 : index
    %c0_19 = arith.constant 0 : index
    %24 = vector.load %arg8[%c0_18, %c0_19] : memref<16x1xf32, #tpu.memory_space<vmem>>, vector<16x1xf32>
    %25 = vector.broadcast %24 : vector<16x1xf32> to vector<16x256xf32>
    %26 = arith.mulf %23, %25 : vector<16x256xf32>
    %cst_20 = arith.constant dense<0.000000e+00> : vector<256xf32>
    %27 = vector.multi_reduction <add>, %26, %cst_20 [0] : vector<16x256xf32> to vector<256xf32>
    %28 = vector.shape_cast %27 : vector<256xf32> to vector<1x256xf32>
    %c0_21 = arith.constant 0 : index
    %c0_22 = arith.constant 0 : index
    %29 = vector.load %arg9[%c0_21, %c0_22] : memref<1x1xf32, #tpu.memory_space<vmem>>, vector<1x1xf32>
    %30 = vector.broadcast %29 : vector<1x1xf32> to vector<1x256xf32>
    %31 = arith.addf %28, %30 : vector<1x256xf32>
    %c0_23 = arith.constant 0 : index
    %c0_24 = arith.constant 0 : index
    %32 = vector.load %arg10[%c0_23, %c0_24] : memref<1x256xf32, #tpu.memory_space<vmem>>, vector<1x256xf32>
    tpu.vector_store %arg10[%c0_23, %c0_24], %31 {strides = array<i32>} : memref<1x256xf32, #tpu.memory_space<vmem>>, vector<1x256xf32>,
    return
  }
  func.func @transform_0(%arg0: i32) -> (i32, i32) {
    %c0_i32 = arith.constant 0 : i32
    %c0_i32_0 = arith.constant 0 : i32
    return %arg0, %c0_i32 : i32, i32
  }
  func.func @transform_1(%arg0: i32) -> (i32, i32) {
    %c0_i32 = arith.constant 0 : i32
    %c0_i32_0 = arith.constant 0 : i32
    %c0_i32_1 = arith.constant 0 : i32
    return %c0_i32, %c0_i32_0 : i32, i32
  }
  func.func @transform_2(%arg0: i32) -> (i32, i32) {
    %c0_i32 = arith.constant 0 : i32
    %c0_i32_0 = arith.constant 0 : i32
    %c0_i32_1 = arith.constant 0 : i32
    return %c0_i32, %c0_i32_0 : i32, i32
  }
  func.func @transform_3(%arg0: i32) -> (i32, i32) {
    %c0_i32 = arith.constant 0 : i32
    %c0_i32_0 = arith.constant 0 : i32
    %c0_i32_1 = arith.constant 0 : i32
    return %c0_i32, %c0_i32_0 : i32, i32
  }
  func.func @transform_4(%arg0: i32) -> (i32, i32) {
    %c0_i32 = arith.constant 0 : i32
    %c0_i32_0 = arith.constant 0 : i32
    %c0_i32_1 = arith.constant 0 : i32
    return %c0_i32, %c0_i32_0 : i32, i32
  }
  func.func @transform_5(%arg0: i32) -> (i32, i32) {
    %c0_i32 = arith.constant 0 : i32
    %c0_i32_0 = arith.constant 0 : i32
    %c0_i32_1 = arith.constant 0 : i32
    return %c0_i32, %c0_i32_0 : i32, i32
  }
  func.func @transform_6(%arg0: i32) -> (i32, i32) {
    %c0_i32 = arith.constant 0 : i32
    %c0_i32_0 = arith.constant 0 : i32
    %c0_i32_1 = arith.constant 0 : i32
    return %c0_i32, %c0_i32_0 : i32, i32
  }
  func.func @transform_7(%arg0: i32) -> (i32, i32) {
    %c0_i32 = arith.constant 0 : i32
    %c0_i32_0 = arith.constant 0 : i32
    %c0_i32_1 = arith.constant 0 : i32
    return %c0_i32, %c0_i32_0 : i32, i32
  }
  func.func @transform_8(%arg0: i32) -> (i32, i32) {
    %c0_i32 = arith.constant 0 : i32
    %c0_i32_0 = arith.constant 0 : i32
    %c0_i32_1 = arith.constant 0 : i32
    return %c0_i32, %c0_i32_0 : i32, i32
  }
  func.func @transform_9(%arg0: i32) -> (i32, i32) {
    %c0_i32 = arith.constant 0 : i32
    %c0_i32_0 = arith.constant 0 : i32
    return %c0_i32, %arg0 : i32, i32
  }
}

</mosaic_0001>

<llo_original>
// kernel: tpu_custom_call.1
$region0: #{tpu_custom_call.1}
  #allocation0 [shape = 'u32[]', space=smem, size = 0x4, offset = 0x4, fixed_abs, tag = 'smem constant byte address 0x4 - core index']
  #allocation1 [shape = 'u32[144,128]{1,0:T(1,128)}', space=vmem, size = 0x12000, scoped, tag = 'internal scratch']
  #allocation2 [shape = 'f32[1,1]{1,0:T(1,128)S(1)}', space=vmem, size = 0x200, scoped, tag = 'scoped memory for tpu_custom_call.1']
  %s0 = inlined_call_operand.vmem [shape: bf16[512,32], index: 0, kind: input, shape index: {}]
  %s1 = inlined_call_operand.vmem [shape: bf16[32,128], index: 1, kind: input, shape index: {}]
  %s2 = inlined_call_operand.vmem [shape: f32[1,128], index: 2, kind: input, shape index: {}]
  %s3 = inlined_call_operand.vmem [shape: bf16[128,64], index: 3, kind: input, shape index: {}]
  %s4 = inlined_call_operand.vmem [shape: f32[1,64], index: 4, kind: input, shape index: {}]
  %s5 = inlined_call_operand.vmem [shape: bf16[16,64], index: 5, kind: input, shape index: {}]
  %s6 = inlined_call_operand.vmem [shape: f32[16,1], index: 6, kind: input, shape index: {}]
  %s7 = inlined_call_operand.vmem [shape: f32[16,1], index: 7, kind: input, shape index: {}]
  %s8 = inlined_call_operand.<no memory space> [shape: f32[1,1], index: 8, kind: input, shape index: {}]
  %s9 = inlined_call_operand.hbm [shape: f32[1,512], index: 9, kind: output, shape index: {}]
  %s10 = sld [smem:[#allocation0]]
  $region69: #{tpu_custom_call.1} parent=0
    _
  %s12 = ssub.s32 1, %s10
  %s13 = scalar_select 0, %s12, %s10
  %v14 = vstv %s8
  %15 = vst [vmem:[#allocation2] sm:$0x1] %v14
  $region1: #{tpu_custom_call.1} parent=0
    #allocation3 [shape = 'u8[2048]{0}', space=vmem, size = 0x800, scoped, tag = 'output window, operand 0']
    #allocation4 [shape = 's32[2]{0}', space=sflag, size = 0x8, scoped, tag = 'scoped memory for tpu_custom_call.1']
    %16 = vsyncpa [#allocation4], 0
    %s17 = scalar_lea.sflag [#allocation4], 1
    %18 = vsyncpa %s17, 0
    loop: start=0, step=1, limit=4
    $region2: #{tpu_custom_call.1} parent=1 // loop_pre_header
      _
    $region3: #{tpu_custom_call.1} parent=1 // loop_header
      %s20 = sphi 0, %s24
      %p21 = scmp.ge.s32.totalorder %s20, 4
      %s30 = sphi 0, %s32
      %s33 = sphi 0, %s30
      %s34 = sphi 0, %s33
      %s50 = sphi 0, %s34
      %s54 = sphi 0, %s54
      %s56 = sphi 0, %s54
      %s57 = sphi 0, %s56
      %s71 = sphi 0, %s57
      %s75 = sphi 0, %s75
      %s77 = sphi 0, %s75
      %s78 = sphi 0, %s77
      %s92 = sphi 0, %s78
      %s96 = sphi 0, %s96
      %s98 = sphi 0, %s96
      %s99 = sphi 0, %s98
      %s113 = sphi 0, %s99
      %s117 = sphi 0, %s117
      %s119 = sphi 0, %s117
      %s120 = sphi 0, %s119
      %s134 = sphi 0, %s120
      %s138 = sphi 0, %s138
      %s140 = sphi 0, %s138
      %s141 = sphi 0, %s140
      %s155 = sphi 0, %s141
      %s159 = sphi 0, %s159
      %s161 = sphi 0, %s159
      %s162 = sphi 0, %s161
      %s176 = sphi 0, %s162
      %s180 = sphi 0, %s180
      %s182 = sphi 0, %s180
      %s183 = sphi 0, %s182
      %s197 = sphi 0, %s183
      %s201 = sphi 0, %s201
      %s203 = sphi 0, %s201
      %s204 = sphi 0, %s203
      %s218 = sphi 0, %s204
      %s224 = sphi 0, %s226
      %s227 = sphi 0, %s224
      %s228 = sphi 0, %s227
      %s244 = sphi 0, %s228
    $region4: #{tpu_custom_call.1} parent=1 // loop_header_branch
      %23 = sbr.rel (%p21) target = $region8
    $region5: #{tpu_custom_call.1} parent=1 // loop_body
      %s25 = ssub.s32 %s20, 1
      %s26 = ssub.s32 %s20, 2
      %s27 = sadd.s32 %s20, 1
      %s28 = ssub.s32 %s20, %s27
      %p29 = scmp.eq.s32.totalorder %s28, 0
      %s31 = sadd.s32 %s30, 1
      %s32 = scalar_select %p29, %s30, %s31
      %p35 = pneg %p29
      %p36 = scmp.eq.s32.totalorder %s20, 1
      %p37 = por %p35, %p36
      %p38 = scmp.ne.s32.totalorder %s30, %s33
      %p39 = scmp.eq.s32.totalorder %s20, 0
      %p40 = por %p38, %p39
      %p41 = scmp.ne.s32.totalorder %s30, %s33
      %p42 = scmp.eq.s32.totalorder %s25, 1
      %p43 = por %p41, %p42
      %p44 = scmp.ne.s32.totalorder %s33, %s34
      %p45 = scmp.eq.s32.totalorder %s25, 0
      %p46 = por %p44, %p45
      %p47 = scmp.ne.s32.totalorder %s33, %s34
      %p48 = scmp.eq.s32.totalorder %s26, 1
      %p49 = por %p47, %p48
      %p51 = scmp.ne.s32.totalorder %s34, %s50
      %p52 = scmp.eq.s32.totalorder %s26, 0
      %p53 = por %p51, %p52
      %s55 = sadd.s32 %s54, 1
      %p58 = scmp.eq.s32.totalorder %s20, 1
      %p59 = scmp.ne.s32.totalorder %s54, %s56
      %p60 = scmp.eq.s32.totalorder %s20, 0
      %p61 = por %p59, %p60
      %p62 = scmp.ne.s32.totalorder %s54, %s56
      %p63 = scmp.eq.s32.totalorder %s25, 1
      %p64 = por %p62, %p63
      %p65 = scmp.ne.s32.totalorder %s56, %s57
      %p66 = scmp.eq.s32.totalorder %s25, 0
      %p67 = por %p65, %p66
      %p68 = scmp.ne.s32.totalorder %s56, %s57
      %p69 = scmp.eq.s32.totalorder %s26, 1
      %p70 = por %p68, %p69
      %p72 = scmp.ne.s32.totalorder %s57, %s71
      %p73 = scmp.eq.s32.totalorder %s26, 0
      %p74 = por %p72, %p73
      %s76 = sadd.s32 %s75, 1
      %p79 = scmp.eq.s32.totalorder %s20, 1
      %p80 = scmp.ne.s32.totalorder %s75, %s77
      %p81 = scmp.eq.s32.totalorder %s20, 0
      %p82 = por %p80, %p81
      %p83 = scmp.ne.s32.totalorder %s75, %s77
      %p84 = scmp.eq.s32.totalorder %s25, 1
      %p85 = por %p83, %p84
      %p86 = scmp.ne.s32.totalorder %s77, %s78
      %p87 = scmp.eq.s32.totalorder %s25, 0
      %p88 = por %p86, %p87
      %p89 = scmp.ne.s32.totalorder %s77, %s78
      %p90 = scmp.eq.s32.totalorder %s26, 1
      %p91 = por %p89, %p90
      %p93 = scmp.ne.s32.totalorder %s78, %s92
      %p94 = scmp.eq.s32.totalorder %s26, 0
      %p95 = por %p93, %p94
      %s97 = sadd.s32 %s96, 1
      %p100 = scmp.eq.s32.totalorder %s20, 1
      %p101 = scmp.ne.s32.totalorder %s96, %s98
      %p102 = scmp.eq.s32.totalorder %s20, 0
      %p103 = por %p101, %p102
      %p104 = scmp.ne.s32.totalorder %s96, %s98
      %p105 = scmp.eq.s32.totalorder %s25, 1
      %p106 = por %p104, %p105
      %p107 = scmp.ne.s32.totalorder %s98, %s99
      %p108 = scmp.eq.s32.totalorder %s25, 0
      %p109 = por %p107, %p108
      %p110 = scmp.ne.s32.totalorder %s98, %s99
      %p111 = scmp.eq.s32.totalorder %s26, 1
      %p112 = por %p110, %p111
      %p114 = scmp.ne.s32.totalorder %s99, %s113
      %p115 = scmp.eq.s32.totalorder %s26, 0
      %p116 = por %p114, %p115
      %s118 = sadd.s32 %s117, 1
      %p121 = scmp.eq.s32.totalorder %s20, 1
      %p122 = scmp.ne.s32.totalorder %s117, %s119
      %p123 = scmp.eq.s32.totalorder %s20, 0
      %p124 = por %p122, %p123
      %p125 = scmp.ne.s32.totalorder %s117, %s119
      %p126 = scmp.eq.s32.totalorder %s25, 1
      %p127 = por %p125, %p126
      %p128 = scmp.ne.s32.totalorder %s119, %s120
      %p129 = scmp.eq.s32.totalorder %s25, 0
      %p130 = por %p128, %p129
      %p131 = scmp.ne.s32.totalorder %s119, %s120
      %p132 = scmp.eq.s32.totalorder %s26, 1
      %p133 = por %p131, %p132
      %p135 = scmp.ne.s32.totalorder %s120, %s134
      %p136 = scmp.eq.s32.totalorder %s26, 0
      %p137 = por %p135, %p136
      %s139 = sadd.s32 %s138, 1
      %p142 = scmp.eq.s32.totalorder %s20, 1
      %p143 = scmp.ne.s32.totalorder %s138, %s140
      %p144 = scmp.eq.s32.totalorder %s20, 0
      %p145 = por %p143, %p144
      %p146 = scmp.ne.s32.totalorder %s138, %s140
      %p147 = scmp.eq.s32.totalorder %s25, 1
      %p148 = por %p146, %p147
      %p149 = scmp.ne.s32.totalorder %s140, %s141
      %p150 = scmp.eq.s32.totalorder %s25, 0
      %p151 = por %p149, %p150
      %p152 = scmp.ne.s32.totalorder %s140, %s141
      %p153 = scmp.eq.s32.totalorder %s26, 1
      %p154 = por %p152, %p153
      %p156 = scmp.ne.s32.totalorder %s141, %s155
      %p157 = scmp.eq.s32.totalorder %s26, 0
      %p158 = por %p156, %p157
      %s160 = sadd.s32 %s159, 1
      %p163 = scmp.eq.s32.totalorder %s20, 1
      %p164 = scmp.ne.s32.totalorder %s159, %s161
      %p165 = scmp.eq.s32.totalorder %s20, 0
      %p166 = por %p164, %p165
      %p167 = scmp.ne.s32.totalorder %s159, %s161
      %p168 = scmp.eq.s32.totalorder %s25, 1
      %p169 = por %p167, %p168
      %p170 = scmp.ne.s32.totalorder %s161, %s162
      %p171 = scmp.eq.s32.totalorder %s25, 0
      %p172 = por %p170, %p171
      %p173 = scmp.ne.s32.totalorder %s161, %s162
      %p174 = scmp.eq.s32.totalorder %s26, 1
      %p175 = por %p173, %p174
      %p177 = scmp.ne.s32.totalorder %s162, %s176
      %p178 = scmp.eq.s32.totalorder %s26, 0
      %p179 = por %p177, %p178
      %s181 = sadd.s32 %s180, 1
      %p184 = scmp.eq.s32.totalorder %s20, 1
      %p185 = scmp.ne.s32.totalorder %s180, %s182
      %p186 = scmp.eq.s32.totalorder %s20, 0
      %p187 = por %p185, %p186
      %p188 = scmp.ne.s32.totalorder %s180, %s182
      %p189 = scmp.eq.s32.totalorder %s25, 1
      %p190 = por %p188, %p189
      %p191 = scmp.ne.s32.totalorder %s182, %s183
      %p192 = scmp.eq.s32.totalorder %s25, 0
      %p193 = por %p191, %p192
      %p194 = scmp.ne.s32.totalorder %s182, %s183
      %p195 = scmp.eq.s32.totalorder %s26, 1
      %p196 = por %p194, %p195
      %p198 = scmp.ne.s32.totalorder %s183, %s197
      %p199 = scmp.eq.s32.totalorder %s26, 0
      %p200 = por %p198, %p199
      %s202 = sadd.s32 %s201, 1
      %p205 = scmp.eq.s32.totalorder %s20, 1
      %p206 = scmp.ne.s32.totalorder %s201, %s203
      %p207 = scmp.eq.s32.totalorder %s20, 0
      %p208 = por %p206, %p207
      %p209 = scmp.ne.s32.totalorder %s201, %s203
      %p210 = scmp.eq.s32.totalorder %s25, 1
      %p211 = por %p209, %p210
      %p212 = scmp.ne.s32.totalorder %s203, %s204
      %p213 = scmp.eq.s32.totalorder %s25, 0
      %p214 = por %p212, %p213
      %p215 = scmp.ne.s32.totalorder %s203, %s204
      %p216 = scmp.eq.s32.totalorder %s26, 1
      %p217 = por %p215, %p216
      %p219 = scmp.ne.s32.totalorder %s204, %s218
      %p220 = scmp.eq.s32.totalorder %s26, 0
      %p221 = por %p219, %p220
      %s222 = ssub.s32 %s20, %s27
      %p223 = scmp.eq.s32.totalorder %s222, 0
      %s225 = sadd.s32 %s224, 1
      %s226 = scalar_select %p223, %s224, %s225
      %p229 = pneg %p223
      %p230 = scmp.eq.s32.totalorder %s20, 1
      %p231 = por %p229, %p230
      %p232 = scmp.ne.s32.totalorder %s224, %s227
      %p233 = scmp.eq.s32.totalorder %s20, 0
      %p234 = por %p232, %p233
      %p235 = scmp.ne.s32.totalorder %s224, %s227
      %p236 = scmp.eq.s32.totalorder %s25, 1
      %p237 = por %p235, %p236
      %p238 = scmp.ne.s32.totalorder %s227, %s228
      %p239 = scmp.eq.s32.totalorder %s25, 0
      %p240 = por %p238, %p239
      %p241 = scmp.ne.s32.totalorder %s227, %s228
      %p242 = scmp.eq.s32.totalorder %s26, 1
      %p243 = por %p241, %p242
      %p245 = scmp.ne.s32.totalorder %s228, %s244
      %p246 = scmp.eq.s32.totalorder %s26, 0
      %p247 = por %p245, %p246
      %p248 = scmp.le.s32.totalorder 1, %s20
      %p249 = scmp.lt.s32.totalorder %s20, 3
      %p250 = pnand %p248, %p249
      %p251 = pneg %p250
      // Predicated region
      $region9: #{tpu_custom_call.1} parent=5 // pred_check
        _
      $region10: #{tpu_custom_call.1} parent=5 // pred_check_branch
        %253 = sbr.rel (%p250) target = $region12
      $region11: #{tpu_custom_call.1} parent=5 // pred_region
        %s254 = ssub.s32 %s20, 1
        // Predicated region
        $region13: #{tpu_custom_call.1} parent=11 // pred_check
          %p255 = pneg %p67
        $region14: #{tpu_custom_call.1} parent=11 // pred_check_branch
          %257 = sbr.rel (%p255) target = $region16
        $region15: #{tpu_custom_call.1} parent=11 // pred_region
          _
        $region16: #{tpu_custom_call.1} parent=11 // pred_fallthru
          _
        // Predicated region
        $region17: #{tpu_custom_call.1} parent=11 // pred_check
          %p258 = pneg %p88
        $region18: #{tpu_custom_call.1} parent=11 // pred_check_branch
          %260 = sbr.rel (%p258) target = $region20
        $region19: #{tpu_custom_call.1} parent=11 // pred_region
          _
        $region20: #{tpu_custom_call.1} parent=11 // pred_fallthru
          _
        // Predicated region
        $region21: #{tpu_custom_call.1} parent=11 // pred_check
          %p261 = pneg %p109
        $region22: #{tpu_custom_call.1} parent=11 // pred_check_branch
          %263 = sbr.rel (%p261) target = $region24
        $region23: #{tpu_custom_call.1} parent=11 // pred_region
          _
        $region24: #{tpu_custom_call.1} parent=11 // pred_fallthru
          _
        // Predicated region
        $region25: #{tpu_custom_call.1} parent=11 // pred_check
          %p264 = pneg %p130
        $region26: #{tpu_custom_call.1} parent=11 // pred_check_branch
          %266 = sbr.rel (%p264) target = $region28
        $region27: #{tpu_custom_call.1} parent=11 // pred_region
          _
        $region28: #{tpu_custom_call.1} parent=11 // pred_fallthru
          _
        // Predicated region
        $region29: #{tpu_custom_call.1} parent=11 // pred_check
          %p267 = pneg %p151
        $region30: #{tpu_custom_call.1} parent=11 // pred_check_branch
          %269 = sbr.rel (%p267) target = $region32
        $region31: #{tpu_custom_call.1} parent=11 // pred_region
          _
        $region32: #{tpu_custom_call.1} parent=11 // pred_fallthru
          _
        // Predicated region
        $region33: #{tpu_custom_call.1} parent=11 // pred_check
          %p270 = pneg %p172
        $region34: #{tpu_custom_call.1} parent=11 // pred_check_branch
          %272 = sbr.rel (%p270) target = $region36
        $region35: #{tpu_custom_call.1} parent=11 // pred_region
          _
        $region36: #{tpu_custom_call.1} parent=11 // pred_fallthru
          _
        // Predicated region
        $region37: #{tpu_custom_call.1} parent=11 // pred_check
          %p273 = pneg %p193
        $region38: #{tpu_custom_call.1} parent=11 // pred_check_branch
          %275 = sbr.rel (%p273) target = $region40
        $region39: #{tpu_custom_call.1} parent=11 // pred_region
          _
        $region40: #{tpu_custom_call.1} parent=11 // pred_fallthru
          _
        // Predicated region
        $region41: #{tpu_custom_call.1} parent=11 // pred_check
          %p276 = pneg %p214
        $region42: #{tpu_custom_call.1} parent=11 // pred_check_branch
          %278 = sbr.rel (%p276) target = $region44
        $region43: #{tpu_custom_call.1} parent=11 // pred_region
          _
        $region44: #{tpu_custom_call.1} parent=11 // pred_fallthru
          _
      $region12: #{tpu_custom_call.1} parent=5 // pred_fallthru
        _
      %p279 = scmp.lt.s32.totalorder %s20, 2
      // Predicated region
      $region45: #{tpu_custom_call.1} parent=5 // pred_check
        %p280 = pneg %p279
      $region46: #{tpu_custom_call.1} parent=5 // pred_check_branch
        %282 = sbr.rel (%p280) target = $region48
      $region47: #{tpu_custom_call.1} parent=5 // pred_region
        // Predicated region
        $region49: #{tpu_custom_call.1} parent=47 // pred_check
          %p283 = pneg %p40
        $region50: #{tpu_custom_call.1} parent=47 // pred_check_branch
          %285 = sbr.rel (%p283) target = $region52
        $region51: #{tpu_custom_call.1} parent=47 // pred_region
          %s286 = smul.u32 32, %s20
          %p287 = scmp.lt.s32.totalorder %s286, 63
          %s288 = scalar_select %p287, %s286, 63
          %s289 = smul.addr %s288, 4
          %s290 = scalar_lea.vmem %s0, %s289
          %s291 = smul.u32 32, %s20
        $region52: #{tpu_custom_call.1} parent=47 // pred_fallthru
          _
      $region48: #{tpu_custom_call.1} parent=5 // pred_fallthru
        _
      %p292 = scmp.le.s32.totalorder 1, %s20
      %p293 = scmp.lt.s32.totalorder %s20, 3
      %p294 = pnand %p292, %p293
      %p295 = pneg %p294
      // Predicated region
      $region53: #{tpu_custom_call.1} parent=5 // pred_check
        _
      $region54: #{tpu_custom_call.1} parent=5 // pred_check_branch
        %297 = sbr.rel (%p294) target = $region56
      $region55: #{tpu_custom_call.1} parent=5 // pred_region
        %s298 = ssub.s32 %s20, 1
        %s299 = smul.u32 32, %s25
        %p300 = scmp.lt.s32.totalorder %s299, 63
        %s301 = scalar_select %p300, %s299, 63
        %s302 = smul.addr %s301, 4
        %s303 = scalar_lea.vmem %s0, %s302
        %p304 = pneg %p46
        %p305 = pneg %p43
        %p306 = pneg %p67
        %p307 = pneg %p64
        %p308 = pneg %p88
        %p309 = pneg %p85
        %p310 = pneg %p109
        %p311 = pneg %p106
        %p312 = pneg %p130
        %p313 = pneg %p127
        %p314 = pneg %p151
        %p315 = pneg %p148
        %p316 = pneg %p172
        %p317 = pneg %p169
        %p318 = pneg %p193
        %p319 = pneg %p190
        %p320 = pneg %p214
        %p321 = pneg %p211
        %p322 = pneg %p240
        %p323 = pneg %p237
        %s324 = sand.u32 %s227, 1
        %s325 = scalar_lea.sflag [#allocation4], %s324
        %s326 = sand.u32 %s227, 1
        %s327 = smul.addr %s326, 2
        %s328 = scalar_lea.vmem [#allocation3], %s327
        %s329 = smul.u32 32, %s25
        %p330 = scmp.lt.s32.totalorder %s329, 63
        %s331 = scalar_select %p330, %s329, 63
        %s332 = smul.addr %s331, 4
        %s333 = scalar_lea.vmem %s0, %s332
        %s334 = smul.u32 32, %s25
        %s335 = smul.u32 2, %s25
        %v337 = vld [vmem:[%s333] sm:$0xf]
        %v338 = vld [vmem:[%s333 + $0x4] sm:$0xf]
        %v339 = vld [vmem:[%s333 + $0x8] sm:$0xf]
        %v340 = vld [vmem:[%s333 + $0xc] sm:$0xf]
        %v341 = vld [vmem:[%s333 + $0x10] sm:$0xf]
        %v342 = vld [vmem:[%s333 + $0x14] sm:$0xf]
        %v343 = vld [vmem:[%s333 + $0x18] sm:$0xf]
        %v344 = vld [vmem:[%s333 + $0x1c] sm:$0xf]
        %v345 = vld [vmem:[%s333 + $0x20] sm:$0xf]
        %v346 = vld [vmem:[%s333 + $0x24] sm:$0xf]
        %v347 = vld [vmem:[%s333 + $0x28] sm:$0xf]
        %v348 = vld [vmem:[%s333 + $0x2c] sm:$0xf]
        %v349 = vld [vmem:[%s333 + $0x30] sm:$0xf]
        %v350 = vld [vmem:[%s333 + $0x34] sm:$0xf]
        %v351 = vld [vmem:[%s333 + $0x38] sm:$0xf]
        %v352 = vld [vmem:[%s333 + $0x3c] sm:$0xf]
        %v353 = vld [vmem:[%s333 + $0x40] sm:$0xf]
        %v354 = vld [vmem:[%s333 + $0x44] sm:$0xf]
        %v355 = vld [vmem:[%s333 + $0x48] sm:$0xf]
        %v356 = vld [vmem:[%s333 + $0x4c] sm:$0xf]
        %v357 = vld [vmem:[%s333 + $0x50] sm:$0xf]
        %v358 = vld [vmem:[%s333 + $0x54] sm:$0xf]
        %v359 = vld [vmem:[%s333 + $0x58] sm:$0xf]
        %v360 = vld [vmem:[%s333 + $0x5c] sm:$0xf]
        %v361 = vld [vmem:[%s333 + $0x60] sm:$0xf]
        %v362 = vld [vmem:[%s333 + $0x64] sm:$0xf]
        %v363 = vld [vmem:[%s333 + $0x68] sm:$0xf]
        %v364 = vld [vmem:[%s333 + $0x6c] sm:$0xf]
        %v365 = vld [vmem:[%s333 + $0x70] sm:$0xf]
        %v366 = vld [vmem:[%s333 + $0x74] sm:$0xf]
        %v367 = vld [vmem:[%s333 + $0x78] sm:$0xf]
        %v368 = vld [vmem:[%s333 + $0x7c] sm:$0xf]
        %v369 = vld [vmem:[%s1] sm:$0xf]
        %v370 = vld [vmem:[%s1 + $0x4] sm:$0xf]
        %v371 = vld [vmem:[%s1 + $0x8] sm:$0xf]
        %v372 = vld [vmem:[%s1 + $0xc] sm:$0xf]
        %v373 = vld [vmem:[%s2] sm:$0x1]
        %v375 = vlaneseq
        %v376 = vshrl.u32 %v375, 7
        %v377 = vsub.s32 0, %v376
        %v378 = vrot.slane %v373, %v377
        %v412 = vunpack.c.l.b16 %v337
        %v413 = vunpack.c.l.b16 %v338
        %v414 = vunpack.c.l.b16 %v339
        %v415 = vunpack.c.l.b16 %v340
        %v416 = vunpack.c.l.b16 %v341
        %v417 = vunpack.c.l.b16 %v342
        %v418 = vunpack.c.l.b16 %v343
        %v419 = vunpack.c.l.b16 %v344
        %v420 = vunpack.c.l.b16 %v345
        %v421 = vunpack.c.l.b16 %v346
        %v422 = vunpack.c.l.b16 %v347
        %v423 = vunpack.c.l.b16 %v348
        %v424 = vunpack.c.l.b16 %v349
        %v425 = vunpack.c.l.b16 %v350
        %v426 = vunpack.c.l.b16 %v351
        %v427 = vunpack.c.l.b16 %v352
        %v428 = vunpack.c.l.b16 %v353
        %v429 = vunpack.c.l.b16 %v354
        %v430 = vunpack.c.l.b16 %v355
        %v431 = vunpack.c.l.b16 %v356
        %v432 = vunpack.c.l.b16 %v357
        %v433 = vunpack.c.l.b16 %v358
        %v434 = vunpack.c.l.b16 %v359
        %v435 = vunpack.c.l.b16 %v360
        %v436 = vunpack.c.l.b16 %v361
        %v437 = vunpack.c.l.b16 %v362
        %v438 = vunpack.c.l.b16 %v363
        %v439 = vunpack.c.l.b16 %v364
        %v440 = vunpack.c.l.b16 %v365
        %v441 = vunpack.c.l.b16 %v366
        %v442 = vunpack.c.l.b16 %v367
        %v443 = vunpack.c.l.b16 %v368
        %v444 = vpack.c.b16 %v413, %v412
        %v445 = vpack.c.b16 %v415, %v414
        %v446 = vpack.c.b16 %v417, %v416
        %v447 = vpack.c.b16 %v419, %v418
        %v448 = vpack.c.b16 %v421, %v420
        %v449 = vpack.c.b16 %v423, %v422
        %v450 = vpack.c.b16 %v425, %v424
        %v451 = vpack.c.b16 %v427, %v426
        %v452 = vpack.c.b16 %v429, %v428
        %v453 = vpack.c.b16 %v431, %v430
        %v454 = vpack.c.b16 %v433, %v432
        %v455 = vpack.c.b16 %v435, %v434
        %v456 = vpack.c.b16 %v437, %v436
        %v457 = vpack.c.b16 %v439, %v438
        %v458 = vpack.c.b16 %v441, %v440
        %v459 = vpack.c.b16 %v443, %v442
        %v464 = vunpack.c.l.b16 %v369
        %v465 = vunpack.c.l.b16 %v370
        %v466 = vunpack.c.l.b16 %v371
        %v467 = vunpack.c.l.b16 %v372
        %v468 = vpack.c.b16 %v465, %v464
        %v469 = vpack.c.b16 %v467, %v466
        %vm472 = vcmask 261120
        %v474 = vsel %vm472, %v444, 0
        %v477 = vsel %vm472, %v445, 0
        %v480 = vsel %vm472, %v446, 0
        %v483 = vsel %vm472, %v447, 0
        %v486 = vsel %vm472, %v448, 0
        %v489 = vsel %vm472, %v449, 0
        %v492 = vsel %vm472, %v450, 0
        %v495 = vsel %vm472, %v451, 0
        %v498 = vsel %vm472, %v452, 0
        %v501 = vsel %vm472, %v453, 0
        %v504 = vsel %vm472, %v454, 0
        %v507 = vsel %vm472, %v455, 0
        %v510 = vsel %vm472, %v456, 0
        %v513 = vsel %vm472, %v457, 0
        %v516 = vsel %vm472, %v458, 0
        %v519 = vsel %vm472, %v459, 0
        %521 = vmatprep.subr.bf16.mxu0 0
        %522 = vmatpush1.bf16.msra.mxu0 %v468
        %523 = vmatprep.subr.bf16.mxu0 0
        %524 = vmatpush1.bf16.msra.mxu0 %v469
        %525 = vmatprep.subr.bf16.mxu0 0
        %526 = vmatpush1.bf16.msra.mxu0 0
        %527 = vmatprep.subr.bf16.mxu0 0
        %528 = vmatpush1.bf16.msra.mxu0 0
        %529 = vmatprep.subr.bf16.mxu0 0
        %530 = vmatpush1.bf16.msra.mxu0 0
        %531 = vmatprep.subr.bf16.mxu0 0
        %532 = vmatpush1.bf16.msra.mxu0 0
        %533 = vmatprep.subr.bf16.mxu0 0
        %534 = vmatpush1.bf16.msra.mxu0 0
        %535 = vmatprep.subr.bf16.mxu0 0
        %536 = vmatpush1.bf16.msra.mxu0 0
        %537 = vmatprep.subr.bf16.mxu0 0
        %538 = vmatpush1.bf16.msra.mxu0 0
        %539 = vmatprep.subr.bf16.mxu0 0
        %540 = vmatpush1.bf16.msra.mxu0 0
        %541 = vmatprep.subr.bf16.mxu0 0
        %542 = vmatpush1.bf16.msra.mxu0 0
        %543 = vmatprep.subr.bf16.mxu0 0
        %544 = vmatpush1.bf16.msra.mxu0 0
        %545 = vmatprep.subr.bf16.mxu0 0
        %546 = vmatpush1.bf16.msra.mxu0 0
        %547 = vmatprep.subr.bf16.mxu0 0
        %548 = vmatpush1.bf16.msra.mxu0 0
        %549 = vmatprep.subr.bf16.mxu0 0
        %550 = vmatpush1.bf16.msra.mxu0 0
        %551 = vmatprep.subr.bf16.mxu0 0
        %552 = vmatpush1.bf16.msra.mxu0 0
        %553 = vmatprep.mubr.bf16.mxu0 0
        %554 = vmatmul.mubr.bf16.gmra.mrb[0].mxu0 %v474
        %v555 = vpop.f32.mrb[0].mxu0
        %v556 = vadd.f32 %v378, %v555
        %v557 = vpop.f32.mrb[0].mxu0
        %v558 = vpop.f32.mrb[0].mxu0
        %v559 = vadd.f32 %v378, %v558
        %v560 = vpop.f32.mrb[0].mxu0
        %561 = vmatprep.mubr.bf16.mxu0 0
        %562 = vmatmul.mubr.bf16.gmra.mrb[0].mxu0 %v477
        %v563 = vpop.f32.mrb[0].mxu0
        %v564 = vadd.f32 %v378, %v563
        %v565 = vpop.f32.mrb[0].mxu0
        %v566 = vpop.f32.mrb[0].mxu0
        %v567 = vadd.f32 %v378, %v566
        %v568 = vpop.f32.mrb[0].mxu0
        %569 = vmatprep.mubr.bf16.mxu0 0
        %570 = vmatmul.mubr.bf16.gmra.mrb[0].mxu0 %v480
        %v571 = vpop.f32.mrb[0].mxu0
        %v572 = vadd.f32 %v378, %v571
        %v573 = vpop.f32.mrb[0].mxu0
        %v574 = vpop.f32.mrb[0].mxu0
        %v575 = vadd.f32 %v378, %v574
        %v576 = vpop.f32.mrb[0].mxu0
        %577 = vmatprep.mubr.bf16.mxu0 0
        %578 = vmatmul.mubr.bf16.gmra.mrb[0].mxu0 %v483
        %v579 = vpop.f32.mrb[0].mxu0
        %v580 = vadd.f32 %v378, %v579
        %v581 = vpop.f32.mrb[0].mxu0
        %v582 = vpop.f32.mrb[0].mxu0
        %v583 = vadd.f32 %v378, %v582
        %v584 = vpop.f32.mrb[0].mxu0
        %585 = vmatprep.mubr.bf16.mxu0 0
        %586 = vmatmul.mubr.bf16.gmra.mrb[0].mxu0 %v486
        %v587 = vpop.f32.mrb[0].mxu0
        %v588 = vadd.f32 %v378, %v587
        %v589 = vpop.f32.mrb[0].mxu0
        %v590 = vpop.f32.mrb[0].mxu0
        %v591 = vadd.f32 %v378, %v590
        %v592 = vpop.f32.mrb[0].mxu0
        %593 = vmatprep.mubr.bf16.mxu0 0
        %594 = vmatmul.mubr.bf16.gmra.mrb[0].mxu0 %v489
        %v595 = vpop.f32.mrb[0].mxu0
        %v596 = vadd.f32 %v378, %v595
        %v597 = vpop.f32.mrb[0].mxu0
        %v598 = vpop.f32.mrb[0].mxu0
        %v599 = vadd.f32 %v378, %v598
        %v600 = vpop.f32.mrb[0].mxu0
        %601 = vmatprep.mubr.bf16.mxu0 0
        %602 = vmatmul.mubr.bf16.gmra.mrb[0].mxu0 %v492
        %v603 = vpop.f32.mrb[0].mxu0
        %v604 = vadd.f32 %v378, %v603
        %v605 = vpop.f32.mrb[0].mxu0
        %v606 = vpop.f32.mrb[0].mxu0
        %v607 = vadd.f32 %v378, %v606
        %v608 = vpop.f32.mrb[0].mxu0
        %609 = vmatprep.mubr.bf16.mxu0 0
        %610 = vmatmul.mubr.bf16.gmra.mrb[0].mxu0 %v495
        %v611 = vpop.f32.mrb[0].mxu0
        %v612 = vadd.f32 %v378, %v611
        %v613 = vpop.f32.mrb[0].mxu0
        %v614 = vpop.f32.mrb[0].mxu0
        %v615 = vadd.f32 %v378, %v614
        %v616 = vpop.f32.mrb[0].mxu0
        %617 = vmatprep.mubr.bf16.mxu0 0
        %618 = vmatmul.mubr.bf16.gmra.mrb[0].mxu0 %v498
        %v619 = vpop.f32.mrb[0].mxu0
        %v620 = vadd.f32 %v378, %v619
        %v621 = vpop.f32.mrb[0].mxu0
        %v622 = vpop.f32.mrb[0].mxu0
        %v623 = vadd.f32 %v378, %v622
        %v624 = vpop.f32.mrb[0].mxu0
        %625 = vmatprep.mubr.bf16.mxu0 0
        %626 = vmatmul.mubr.bf16.gmra.mrb[0].mxu0 %v501
        %v627 = vpop.f32.mrb[0].mxu0
        %v628 = vadd.f32 %v378, %v627
        %v629 = vpop.f32.mrb[0].mxu0
        %v630 = vpop.f32.mrb[0].mxu0
        %v631 = vadd.f32 %v378, %v630
        %v632 = vpop.f32.mrb[0].mxu0
        %633 = vmatprep.mubr.bf16.mxu0 0
        %634 = vmatmul.mubr.bf16.gmra.mrb[0].mxu0 %v504
        %v635 = vpop.f32.mrb[0].mxu0
        %v636 = vadd.f32 %v378, %v635
        %v637 = vpop.f32.mrb[0].mxu0
        %v638 = vpop.f32.mrb[0].mxu0
        %v639 = vadd.f32 %v378, %v638
        %v640 = vpop.f32.mrb[0].mxu0
        %641 = vmatprep.mubr.bf16.mxu0 0
        %642 = vmatmul.mubr.bf16.gmra.mrb[0].mxu0 %v507
        %v643 = vpop.f32.mrb[0].mxu0
        %v644 = vadd.f32 %v378, %v643
        %v645 = vpop.f32.mrb[0].mxu0
        %v646 = vpop.f32.mrb[0].mxu0
        %v647 = vadd.f32 %v378, %v646
        %v648 = vpop.f32.mrb[0].mxu0
        %649 = vmatprep.mubr.bf16.mxu0 0
        %650 = vmatmul.mubr.bf16.gmra.mrb[0].mxu0 %v510
        %v651 = vpop.f32.mrb[0].mxu0
        %v652 = vadd.f32 %v378, %v651
        %v653 = vpop.f32.mrb[0].mxu0
        %v654 = vpop.f32.mrb[0].mxu0
        %v655 = vadd.f32 %v378, %v654
        %v656 = vpop.f32.mrb[0].mxu0
        %657 = vmatprep.mubr.bf16.mxu0 0
        %658 = vmatmul.mubr.bf16.gmra.mrb[0].mxu0 %v513
        %v659 = vpop.f32.mrb[0].mxu0
        %v660 = vadd.f32 %v378, %v659
        %v661 = vpop.f32.mrb[0].mxu0
        %v662 = vpop.f32.mrb[0].mxu0
        %v663 = vadd.f32 %v378, %v662
        %v664 = vpop.f32.mrb[0].mxu0
        %665 = vmatprep.mubr.bf16.mxu0 0
        %666 = vmatmul.mubr.bf16.gmra.mrb[0].mxu0 %v516
        %v667 = vpop.f32.mrb[0].mxu0
        %v668 = vadd.f32 %v378, %v667
        %v669 = vpop.f32.mrb[0].mxu0
        %v670 = vpop.f32.mrb[0].mxu0
        %v671 = vadd.f32 %v378, %v670
        %v672 = vpop.f32.mrb[0].mxu0
        %673 = vmatprep.mubr.bf16.mxu0 0
        %674 = vmatmul.mubr.bf16.gmra.mrb[0].mxu0 %v519
        %v675 = vpop.f32.mrb[0].mxu0
        %v676 = vadd.f32 %v378, %v675
        %v677 = vpop.f32.mrb[0].mxu0
        %v678 = vpop.f32.mrb[0].mxu0
        %v679 = vadd.f32 %v378, %v678
        %v680 = vpop.f32.mrb[0].mxu0
        %681 = vdwg.mxu0
        %v682 = vmax.f32 %v556, 0.0
        %v683 = vmax.f32 %v559, 0.0
        %v684 = vmax.f32 %v564, 0.0
        %v685 = vmax.f32 %v567, 0.0
        %v686 = vmax.f32 %v572, 0.0
        %v687 = vmax.f32 %v575, 0.0
        %v688 = vmax.f32 %v580, 0.0
        %v689 = vmax.f32 %v583, 0.0
        %v690 = vmax.f32 %v588, 0.0
        %v691 = vmax.f32 %v591, 0.0
        %v692 = vmax.f32 %v596, 0.0
        %v693 = vmax.f32 %v599, 0.0
        %v694 = vmax.f32 %v604, 0.0
        %v695 = vmax.f32 %v607, 0.0
        %v696 = vmax.f32 %v612, 0.0
        %v697 = vmax.f32 %v615, 0.0
        %v698 = vmax.f32 %v620, 0.0
        %v699 = vmax.f32 %v623, 0.0
        %v700 = vmax.f32 %v628, 0.0
        %v701 = vmax.f32 %v631, 0.0
        %v702 = vmax.f32 %v636, 0.0
        %v703 = vmax.f32 %v639, 0.0
        %v704 = vmax.f32 %v644, 0.0
        %v705 = vmax.f32 %v647, 0.0
        %v706 = vmax.f32 %v652, 0.0
        %v707 = vmax.f32 %v655, 0.0
        %v708 = vmax.f32 %v660, 0.0
        %v709 = vmax.f32 %v663, 0.0
        %v710 = vmax.f32 %v668, 0.0
        %v711 = vmax.f32 %v671, 0.0
        %v712 = vmax.f32 %v676, 0.0
        %v713 = vmax.f32 %v679, 0.0
        %v714 = vpack.c.bf16 %v683, %v682
        %v715 = vpack.c.bf16 %v685, %v684
        %v716 = vpack.c.bf16 %v687, %v686
        %v717 = vpack.c.bf16 %v689, %v688
        %v718 = vpack.c.bf16 %v691, %v690
        %v719 = vpack.c.bf16 %v693, %v692
        %v720 = vpack.c.bf16 %v695, %v694
        %v721 = vpack.c.bf16 %v697, %v696
        %v722 = vpack.c.bf16 %v699, %v698
        %v723 = vpack.c.bf16 %v701, %v700
        %v724 = vpack.c.bf16 %v703, %v702
        %v725 = vpack.c.bf16 %v705, %v704
        %v726 = vpack.c.bf16 %v707, %v706
        %v727 = vpack.c.bf16 %v709, %v708
        %v728 = vpack.c.bf16 %v711, %v710
        %v729 = vpack.c.bf16 %v713, %v712
        %v730 = vld [vmem:[%s3] sm:$0xf]
        %v731 = vld [vmem:[%s3 + $0x4] sm:$0xf]
        %v732 = vld [vmem:[%s3 + $0x8] sm:$0xf]
        %v733 = vld [vmem:[%s3 + $0xc] sm:$0xf]
        %v734 = vld [vmem:[%s3 + $0x10] sm:$0xf]
        %v735 = vld [vmem:[%s3 + $0x14] sm:$0xf]
        %v736 = vld [vmem:[%s3 + $0x18] sm:$0xf]
        %v737 = vld [vmem:[%s3 + $0x1c] sm:$0xf]
        %v738 = vld [vmem:[%s3 + $0x20] sm:$0xf]
        %v739 = vld [vmem:[%s3 + $0x24] sm:$0xf]
        %v740 = vld [vmem:[%s3 + $0x28] sm:$0xf]
        %v741 = vld [vmem:[%s3 + $0x2c] sm:$0xf]
        %v742 = vld [vmem:[%s3 + $0x30] sm:$0xf]
        %v743 = vld [vmem:[%s3 + $0x34] sm:$0xf]
        %v744 = vld [vmem:[%s3 + $0x38] sm:$0xf]
        %v745 = vld [vmem:[%s3 + $0x3c] sm:$0xf]
        %v746 = vld [vmem:[%s4] sm:$0x1]
        %v748 = vlaneseq
        %v749 = vshrl.u32 %v748, 7
        %v750 = vsub.s32 0, %v749
        %v751 = vrot.slane %v746, %v750
        %v769 = vunpack.c.l.b16 %v730
        %v770 = vunpack.c.l.b16 %v731
        %v771 = vunpack.c.l.b16 %v732
        %v772 = vunpack.c.l.b16 %v733
        %v773 = vunpack.c.l.b16 %v734
        %v774 = vunpack.c.l.b16 %v735
        %v775 = vunpack.c.l.b16 %v736
        %v776 = vunpack.c.l.b16 %v737
        %v777 = vunpack.c.l.b16 %v738
        %v778 = vunpack.c.l.b16 %v739
        %v779 = vunpack.c.l.b16 %v740
        %v780 = vunpack.c.l.b16 %v741
        %v781 = vunpack.c.l.b16 %v742
        %v782 = vunpack.c.l.b16 %v743
        %v783 = vunpack.c.l.b16 %v744
        %v784 = vunpack.c.l.b16 %v745
        %v785 = vpack.c.b16 %v770, %v769
        %v786 = vpack.c.b16 %v772, %v771
        %v787 = vpack.c.b16 %v774, %v773
        %v788 = vpack.c.b16 %v776, %v775
        %v789 = vpack.c.b16 %v778, %v777
        %v790 = vpack.c.b16 %v780, %v779
        %v791 = vpack.c.b16 %v782, %v781
        %v792 = vpack.c.b16 %v784, %v783
        %801 = vmatprep.subr.bf16.mxu0 0
        %802 = vmatpush1.bf16.msra.mxu0 %v785
        %803 = vmatprep.subr.bf16.mxu0 0
        %804 = vmatpush1.bf16.msra.mxu0 %v786
        %805 = vmatprep.subr.bf16.mxu0 0
        %806 = vmatpush1.bf16.msra.mxu0 %v787
        %807 = vmatprep.subr.bf16.mxu0 0
        %808 = vmatpush1.bf16.msra.mxu0 %v788
        %809 = vmatprep.subr.bf16.mxu0 0
        %810 = vmatpush1.bf16.msra.mxu0 %v789
        %811 = vmatprep.subr.bf16.mxu0 0
        %812 = vmatpush1.bf16.msra.mxu0 %v790
        %813 = vmatprep.subr.bf16.mxu0 0
        %814 = vmatpush1.bf16.msra.mxu0 %v791
        %815 = vmatprep.subr.bf16.mxu0 0
        %816 = vmatpush1.bf16.msra.mxu0 %v792
        %817 = vmatprep.subr.bf16.mxu0 0
        %818 = vmatpush1.bf16.msra.mxu0 0
        %819 = vmatprep.subr.bf16.mxu0 0
        %820 = vmatpush1.bf16.msra.mxu0 0
        %821 = vmatprep.subr.bf16.mxu0 0
        %822 = vmatpush1.bf16.msra.mxu0 0
        %823 = vmatprep.subr.bf16.mxu0 0
        %824 = vmatpush1.bf16.msra.mxu0 0
        %825 = vmatprep.subr.bf16.mxu0 0
        %826 = vmatpush1.bf16.msra.mxu0 0
        %827 = vmatprep.subr.bf16.mxu0 0
        %828 = vmatpush1.bf16.msra.mxu0 0
        %829 = vmatprep.subr.bf16.mxu0 0
        %830 = vmatpush1.bf16.msra.mxu0 0
        %831 = vmatprep.subr.bf16.mxu0 0
        %832 = vmatpush1.bf16.msra.mxu0 0
        %833 = vmatprep.mubr.bf16.mxu0 0
        %834 = vmatmul.mubr.bf16.gmra.mrb[0].mxu0 %v714
        %v835 = vpop.f32.mrb[0].mxu0
        %v836 = vadd.f32 %v751, %v835
        %v837 = vpop.f32.mrb[0].mxu0
        %v838 = vpop.f32.mrb[0].mxu0
        %v839 = vadd.f32 %v751, %v838
        %v840 = vpop.f32.mrb[0].mxu0
        %841 = vmatprep.mubr.bf16.mxu0 0
        %842 = vmatmul.mubr.bf16.gmra.mrb[0].mxu0 %v715
        %v843 = vpop.f32.mrb[0].mxu0
        %v844 = vadd.f32 %v751, %v843
        %v845 = vpop.f32.mrb[0].mxu0
        %v846 = vpop.f32.mrb[0].mxu0
        %v847 = vadd.f32 %v751, %v846
        %v848 = vpop.f32.mrb[0].mxu0
        %849 = vmatprep.mubr.bf16.mxu0 0
        %850 = vmatmul.mubr.bf16.gmra.mrb[0].mxu0 %v716
        %v851 = vpop.f32.mrb[0].mxu0
        %v852 = vadd.f32 %v751, %v851
        %v853 = vpop.f32.mrb[0].mxu0
        %v854 = vpop.f32.mrb[0].mxu0
        %v855 = vadd.f32 %v751, %v854
        %v856 = vpop.f32.mrb[0].mxu0
        %857 = vmatprep.mubr.bf16.mxu0 0
        %858 = vmatmul.mubr.bf16.gmra.mrb[0].mxu0 %v717
        %v859 = vpop.f32.mrb[0].mxu0
        %v860 = vadd.f32 %v751, %v859
        %v861 = vpop.f32.mrb[0].mxu0
        %v862 = vpop.f32.mrb[0].mxu0
        %v863 = vadd.f32 %v751, %v862
        %v864 = vpop.f32.mrb[0].mxu0
        %865 = vmatprep.mubr.bf16.mxu0 0
        %866 = vmatmul.mubr.bf16.gmra.mrb[0].mxu0 %v718
        %v867 = vpop.f32.mrb[0].mxu0
        %v868 = vadd.f32 %v751, %v867
        %v869 = vpop.f32.mrb[0].mxu0
        %v870 = vpop.f32.mrb[0].mxu0
        %v871 = vadd.f32 %v751, %v870
        %v872 = vpop.f32.mrb[0].mxu0
        %873 = vmatprep.mubr.bf16.mxu0 0
        %874 = vmatmul.mubr.bf16.gmra.mrb[0].mxu0 %v719
        %v875 = vpop.f32.mrb[0].mxu0
        %v876 = vadd.f32 %v751, %v875
        %v877 = vpop.f32.mrb[0].mxu0
        %v878 = vpop.f32.mrb[0].mxu0
        %v879 = vadd.f32 %v751, %v878
        %v880 = vpop.f32.mrb[0].mxu0
        %881 = vmatprep.mubr.bf16.mxu0 0
        %882 = vmatmul.mubr.bf16.gmra.mrb[0].mxu0 %v720
        %v883 = vpop.f32.mrb[0].mxu0
        %v884 = vadd.f32 %v751, %v883
        %v885 = vpop.f32.mrb[0].mxu0
        %v886 = vpop.f32.mrb[0].mxu0
        %v887 = vadd.f32 %v751, %v886
        %v888 = vpop.f32.mrb[0].mxu0
        %889 = vmatprep.mubr.bf16.mxu0 0
        %890 = vmatmul.mubr.bf16.gmra.mrb[0].mxu0 %v721
        %v891 = vpop.f32.mrb[0].mxu0
        %v892 = vadd.f32 %v751, %v891
        %v893 = vpop.f32.mrb[0].mxu0
        %v894 = vpop.f32.mrb[0].mxu0
        %v895 = vadd.f32 %v751, %v894
        %v896 = vpop.f32.mrb[0].mxu0
        %897 = vmatprep.mubr.bf16.mxu0 0
        %898 = vmatmul.mubr.bf16.gmra.mrb[0].mxu0 %v722
        %v899 = vpop.f32.mrb[0].mxu0
        %v900 = vadd.f32 %v751, %v899
        %v901 = vpop.f32.mrb[0].mxu0
        %v902 = vpop.f32.mrb[0].mxu0
        %v903 = vadd.f32 %v751, %v902
        %v904 = vpop.f32.mrb[0].mxu0
        %905 = vmatprep.mubr.bf16.mxu0 0
        %906 = vmatmul.mubr.bf16.gmra.mrb[0].mxu0 %v723
        %v907 = vpop.f32.mrb[0].mxu0
        %v908 = vadd.f32 %v751, %v907
        %v909 = vpop.f32.mrb[0].mxu0
        %v910 = vpop.f32.mrb[0].mxu0
        %v911 = vadd.f32 %v751, %v910
        %v912 = vpop.f32.mrb[0].mxu0
        %913 = vmatprep.mubr.bf16.mxu0 0
        %914 = vmatmul.mubr.bf16.gmra.mrb[0].mxu0 %v724
        %v915 = vpop.f32.mrb[0].mxu0
        %v916 = vadd.f32 %v751, %v915
        %v917 = vpop.f32.mrb[0].mxu0
        %v918 = vpop.f32.mrb[0].mxu0
        %v919 = vadd.f32 %v751, %v918
        %v920 = vpop.f32.mrb[0].mxu0
        %921 = vmatprep.mubr.bf16.mxu0 0
        %922 = vmatmul.mubr.bf16.gmra.mrb[0].mxu0 %v725
        %v923 = vpop.f32.mrb[0].mxu0
        %v924 = vadd.f32 %v751, %v923
        %v925 = vpop.f32.mrb[0].mxu0
        %v926 = vpop.f32.mrb[0].mxu0
        %v927 = vadd.f32 %v751, %v926
        %v928 = vpop.f32.mrb[0].mxu0
        %929 = vmatprep.mubr.bf16.mxu0 0
        %930 = vmatmul.mubr.bf16.gmra.mrb[0].mxu0 %v726
        %v931 = vpop.f32.mrb[0].mxu0
        %v932 = vadd.f32 %v751, %v931
        %v933 = vpop.f32.mrb[0].mxu0
        %v934 = vpop.f32.mrb[0].mxu0
        %v935 = vadd.f32 %v751, %v934
        %v936 = vpop.f32.mrb[0].mxu0
        %937 = vmatprep.mubr.bf16.mxu0 0
        %938 = vmatmul.mubr.bf16.gmra.mrb[0].mxu0 %v727
        %v939 = vpop.f32.mrb[0].mxu0
        %v940 = vadd.f32 %v751, %v939
        %v941 = vpop.f32.mrb[0].mxu0
        %v942 = vpop.f32.mrb[0].mxu0
        %v943 = vadd.f32 %v751, %v942
        %v944 = vpop.f32.mrb[0].mxu0
        %945 = vmatprep.mubr.bf16.mxu0 0
        %946 = vmatmul.mubr.bf16.gmra.mrb[0].mxu0 %v728
        %v947 = vpop.f32.mrb[0].mxu0
        %v948 = vadd.f32 %v751, %v947
        %v949 = vpop.f32.mrb[0].mxu0
        %v950 = vpop.f32.mrb[0].mxu0
        %v951 = vadd.f32 %v751, %v950
        %v952 = vpop.f32.mrb[0].mxu0
        %953 = vmatprep.mubr.bf16.mxu0 0
        %954 = vmatmul.mubr.bf16.gmra.mrb[0].mxu0 %v729
        %v955 = vpop.f32.mrb[0].mxu0
        %v956 = vadd.f32 %v751, %v955
        %v957 = vpop.f32.mrb[0].mxu0
        %v958 = vpop.f32.mrb[0].mxu0
        %v959 = vadd.f32 %v751, %v958
        %v960 = vpop.f32.mrb[0].mxu0
        %961 = vdwg.mxu0
        %v962 = vmax.f32 %v836, 0.0
        %v963 = vmax.f32 %v839, 0.0
        %v964 = vmax.f32 %v844, 0.0
        %v965 = vmax.f32 %v847, 0.0
        %v966 = vmax.f32 %v852, 0.0
        %v967 = vmax.f32 %v855, 0.0
        %v968 = vmax.f32 %v860, 0.0
        %v969 = vmax.f32 %v863, 0.0
        %v970 = vmax.f32 %v868, 0.0
        %v971 = vmax.f32 %v871, 0.0
        %v972 = vmax.f32 %v876, 0.0
        %v973 = vmax.f32 %v879, 0.0
        %v974 = vmax.f32 %v884, 0.0
        %v975 = vmax.f32 %v887, 0.0
        %v976 = vmax.f32 %v892, 0.0
        %v977 = vmax.f32 %v895, 0.0
        %v978 = vmax.f32 %v900, 0.0
        %v979 = vmax.f32 %v903, 0.0
        %v980 = vmax.f32 %v908, 0.0
        %v981 = vmax.f32 %v911, 0.0
        %v982 = vmax.f32 %v916, 0.0
        %v983 = vmax.f32 %v919, 0.0
        %v984 = vmax.f32 %v924, 0.0
        %v985 = vmax.f32 %v927, 0.0
        %v986 = vmax.f32 %v932, 0.0
        %v987 = vmax.f32 %v935, 0.0
        %v988 = vmax.f32 %v940, 0.0
        %v989 = vmax.f32 %v943, 0.0
        %v990 = vmax.f32 %v948, 0.0
        %v991 = vmax.f32 %v951, 0.0
        %v992 = vmax.f32 %v956, 0.0
        %v993 = vmax.f32 %v959, 0.0
        %v994 = vld [vmem:[%s5] sm:$0xf]
        %v995 = vld [vmem:[%s5 + $0x4] sm:$0xf]
        %v996 = vpack.c.bf16 %v963, %v962
        %v997 = vpack.c.bf16 %v965, %v964
        %v998 = vpack.c.bf16 %v967, %v966
        %v999 = vpack.c.bf16 %v969, %v968
        %v1000 = vpack.c.bf16 %v971, %v970
        %v1001 = vpack.c.bf16 %v973, %v972
        %v1002 = vpack.c.bf16 %v975, %v974
        %v1003 = vpack.c.bf16 %v977, %v976
        %v1004 = vpack.c.bf16 %v979, %v978
        %v1005 = vpack.c.bf16 %v981, %v980
        %v1006 = vpack.c.bf16 %v983, %v982
        %v1007 = vpack.c.bf16 %v985, %v984
        %v1008 = vpack.c.bf16 %v987, %v986
        %v1009 = vpack.c.bf16 %v989, %v988
        %v1010 = vpack.c.bf16 %v991, %v990
        %v1011 = vpack.c.bf16 %v993, %v992
        %v1012 = vld [vmem:[%s6] sm:$0xff]
        %v1013 = vld [vmem:[%s6 + $0x8] sm:$0xff]
        %1015 = vset.pattern.permute.xlu0 0
        %1016 = vperm.xlu0 %1015, %v1012
        %v1017 = vpop.permute.xlu0 %1016
        %1020 = vset.pattern.permute.xlu0 0
        %1021 = vperm.xlu0 %1020, %v1013
        %v1022 = vpop.permute.xlu0 %1021
        %v1026 = vunpack.c.l.b16 %v994
        %v1027 = vunpack.c.l.b16 %v995
        %v1028 = vpack.c.b16 %v1027, %v1026
        %vm1029 = vcmask 523264
        %v1031 = vsel %vm1029, %v1028, 0
        %v1034 = vsel %vm1029, %v996, 0
        %v1037 = vsel %vm1029, %v997, 0
        %v1040 = vsel %vm1029, %v998, 0
        %v1043 = vsel %vm1029, %v999, 0
        %v1046 = vsel %vm1029, %v1000, 0
        %v1049 = vsel %vm1029, %v1001, 0
        %v1052 = vsel %vm1029, %v1002, 0
        %v1055 = vsel %vm1029, %v1003, 0
        %v1058 = vsel %vm1029, %v1004, 0
        %v1061 = vsel %vm1029, %v1005, 0
        %v1064 = vsel %vm1029, %v1006, 0
        %v1067 = vsel %vm1029, %v1007, 0
        %v1070 = vsel %vm1029, %v1008, 0
        %v1073 = vsel %vm1029, %v1009, 0
        %v1076 = vsel %vm1029, %v1010, 0
        %v1079 = vsel %vm1029, %v1011, 0
        %1081 = vmatprep.subr.bf16.mxu0 0
        %1082 = vmatpush1.bf16.xpose.msra.mxu0 %v1034
        %1083 = vmatprep.subr.bf16.mxu0 0
        %1084 = vmatpush1.bf16.xpose.msra.mxu0 %v1037
        %1085 = vmatprep.subr.bf16.mxu0 0
        %1086 = vmatpush1.bf16.xpose.msra.mxu0 %v1040
        %1087 = vmatprep.subr.bf16.mxu0 0
        %1088 = vmatpush1.bf16.xpose.msra.mxu0 %v1043
        %1089 = vmatprep.subr.bf16.mxu0 0
        %1090 = vmatpush1.bf16.xpose.msra.mxu0 %v1046
        %1091 = vmatprep.subr.bf16.mxu0 0
        %1092 = vmatpush1.bf16.xpose.msra.mxu0 %v1049
        %1093 = vmatprep.subr.bf16.mxu0 0
        %1094 = vmatpush1.bf16.xpose.msra.mxu0 %v1052
        %1095 = vmatprep.subr.bf16.mxu0 0
        %1096 = vmatpush1.bf16.xpose.msra.mxu0 %v1055
        %1097 = vmatprep.subr.bf16.mxu0 0
        %1098 = vmatpush1.bf16.xpose.msra.mxu0 %v1058
        %1099 = vmatprep.subr.bf16.mxu0 0
        %1100 = vmatpush1.bf16.xpose.msra.mxu0 %v1061
        %1101 = vmatprep.subr.bf16.mxu0 0
        %1102 = vmatpush1.bf16.xpose.msra.mxu0 %v1064
        %1103 = vmatprep.subr.bf16.mxu0 0
        %1104 = vmatpush1.bf16.xpose.msra.mxu0 %v1067
        %1105 = vmatprep.subr.bf16.mxu0 0
        %1106 = vmatpush1.bf16.xpose.msra.mxu0 %v1070
        %1107 = vmatprep.subr.bf16.mxu0 0
        %1108 = vmatpush1.bf16.xpose.msra.mxu0 %v1073
        %1109 = vmatprep.subr.bf16.mxu0 0
        %1110 = vmatpush1.bf16.xpose.msra.mxu0 %v1076
        %1111 = vmatprep.subr.bf16.mxu0 0
        %1112 = vmatpush1.bf16.xpose.msra.mxu0 %v1079
        %1113 = vmatprep.mubr.bf16.mxu0 0
        %1114 = vmatmul.mubr.bf16.gmra.mrb[0].mxu0 %v1031
        %v1115 = vpop.f32.mrb[0].mxu0
        %v1116 = vadd.f32 %v1017, %v1115
        %v1117 = vpop.f32.mrb[0].mxu0
        %v1118 = vadd.f32 %v1017, %v1117
        %v1119 = vpop.f32.mrb[0].mxu0
        %v1120 = vadd.f32 %v1022, %v1119
        %v1121 = vpop.f32.mrb[0].mxu0
        %v1122 = vadd.f32 %v1022, %v1121
        %1123 = vdwg.mxu0
        %v1124 = vmax.f32 %v1116, 0.0
        %v1125 = vmax.f32 %v1118, 0.0
        %v1126 = vmax.f32 %v1120, 0.0
        %v1127 = vmax.f32 %v1122, 0.0
        %v1128 = vld [vmem:[%s7] sm:$0xff]
        %v1129 = vld [vmem:[%s7 + $0x8] sm:$0xff]
        %1131 = vset.pattern.permute.xlu0 0
        %1132 = vperm.xlu0 %1131, %v1128
        %v1133 = vpop.permute.xlu0 %1132
        %1136 = vset.pattern.permute.xlu0 0
        %1137 = vperm.xlu0 %1136, %v1129
        %v1138 = vpop.permute.xlu0 %1137
        %v1140 = vmul.f32 %v1124, %v1133
        %v1141 = vmul.f32 %v1125, %v1133
        %v1142 = vmul.f32 %v1126, %v1138
        %v1143 = vmul.f32 %v1127, %v1138
        %v1144 = vadd.f32 %v1140, %v1142
        %v1145 = vrot.slane %v1144, 4
        %v1146 = vadd.f32 %v1144, %v1145
        %v1147 = vrot.slane %v1146, 2
        %v1148 = vadd.f32 %v1146, %v1147
        %v1149 = vrot.slane %v1148, 1
        %v1150 = vadd.f32 %v1148, %v1149
        %v1151 = vadd.f32 %v1141, %v1143
        %v1152 = vrot.slane %v1151, 4
        %v1153 = vadd.f32 %v1151, %v1152
        %v1154 = vrot.slane %v1153, 2
        %v1155 = vadd.f32 %v1153, %v1154
        %v1156 = vrot.slane %v1155, 1
        %v1157 = vadd.f32 %v1155, %v1156
        %v1158 = vld [vmem:[#allocation2] sm:$0x1]
        %1160 = vset.pattern.permute.xlu0 0
        %1161 = vperm.xlu0 %1160, %v1158
        %v1162 = vpop.permute.xlu0 %1161
        %v1164 = vlaneseq
        %v1165 = vshrl.u32 %v1164, 7
        %v1166 = vsub.s32 0, %v1165
        %v1167 = vrot.slane %v1162, %v1166
        %v1168 = vadd.f32 %v1150, %v1167
        %v1169 = vadd.f32 %v1157, %v1167
        %v1172 = vcombine.low %v1168, %v1169
        %v1174 = vunpack.c.l.s4 1966171168
        %v1175 = vunpack.c.0.s8 %v1174
        %v1176 = vlaneseq
        %v1177 = vshrl.u32 %v1176, 7
        %v1178 = vsub.s32 %v1175, %v1177
        %v1179 = vrot.slane %v1172, %v1178
        %v1181 = vunpack.c.l.s4 1966171168
        %v1182 = vunpack.c.0.s8 %v1181
        %v1183 = vlaneseq
        %v1184 = vshrl.u32 %v1183, 7
        %v1185 = vsub.s32 %v1182, %v1184
        %v1186 = vrot.slane %v1179, %v1185
        %v1188 = vlaneseq
        %vm1189 = vcmp.ge.s32.totalorder %v1188, 0
        %vm1190 = vcmp.lt.s32.totalorder %v1188, 256
        %vm1191 = vmand %vm1189, %vm1190
        %1192 = vst.msk [vmem:[%s328] sm:$0x3] %vm1191, %v1186
        %s1193 = sand.u32 %s227, 1
        %s1194 = scalar_lea.sflag [#allocation4], %s1193
        %s1195 = sand.u32 %s227, 1
        %s1196 = smul.addr %s1195, 2
        %s1197 = scalar_lea.vmem [#allocation3], %s1196
        // Predicated region
        $region57: #{tpu_custom_call.1} parent=55 // pred_check
          %p1198 = pneg %p237
        $region58: #{tpu_custom_call.1} parent=55 // pred_check_branch
          %1200 = sbr.rel (%p1198) target = $region60
        $region59: #{tpu_custom_call.1} parent=55 // pred_region
          %s1201 = smul.u32 2, %s25
          %s1203 = ssub.s32 32, 32
          %1204 = vsyncadd %s1194, %s1203
          %s1205 = smul.addr %s1201, 16
          %s1206 = scalar_lea.hbm %s9, %s1205
          %s1208 = sshll.u32 %s1197, 4
          %s1209 = int_to_ptr.vmem [resolvable:$true] %s1208
          %1211 = dma.vmem_to_hbm [thread:$0]  %s1209, 32, %s1206, %s1194
        $region60: #{tpu_custom_call.1} parent=55 // pred_fallthru
          _
      $region56: #{tpu_custom_call.1} parent=5 // pred_fallthru
        _
      %p1212 = scmp.le.s32.totalorder 2, %s20
      // Predicated region
      $region61: #{tpu_custom_call.1} parent=5 // pred_check
        %p1213 = pneg %p1212
      $region62: #{tpu_custom_call.1} parent=5 // pred_check_branch
        %1215 = sbr.rel (%p1213) target = $region64
      $region63: #{tpu_custom_call.1} parent=5 // pred_region
        %s1216 = ssub.s32 %s20, 2
        // Predicated region
        $region65: #{tpu_custom_call.1} parent=63 // pred_check
          %p1217 = pneg %p243
        $region66: #{tpu_custom_call.1} parent=63 // pred_check_branch
          %1219 = sbr.rel (%p1217) target = $region68
        $region67: #{tpu_custom_call.1} parent=63 // pred_region
          %s1220 = sand.u32 %s228, 1
          %s1221 = scalar_lea.sflag [#allocation4], %s1220
          %s1222 = sand.u32 %s228, 1
          %s1223 = smul.addr %s1222, 2
          %s1224 = scalar_lea.vmem [#allocation3], %s1223
          %1225 = dma.done %s1221, 32
        $region68: #{tpu_custom_call.1} parent=63 // pred_fallthru
          _
      $region64: #{tpu_custom_call.1} parent=5 // pred_fallthru
        _
    $region6: #{tpu_custom_call.1} parent=1 // loop_footer
      %s24 = sadd.s32 1, %s20
    $region7: #{tpu_custom_call.1} parent=1 // loop_footer_branch
      %19 = sbr.rel target = $region3
    $region8: #{tpu_custom_call.1} parent=1 // loop_exit
      _
    %1226 = vsyncpa [#allocation4], 1
    %s1227 = scalar_lea.sflag [#allocation4], 1
    %1228 = vsyncpa %s1227, 1

</llo_original>
